<compile_context>
chip_gen: v7x
topology: tpu7x:2x2x1
jax: 0.10.0
libtpu: 0.0.40
codegen_flags: <defaults>
</compile_context>

<pallas_src>
import jax
import jax.numpy as jnp
from jax.experimental import pallas as pl
from jax.experimental.pallas import tpu as pltpu

NUM_GROUPS = 32
EPS = 1e-5


def _attention_block_kernel(x_ref, wqkv_ref, bqkv_ref, wn_ref, bn_ref, gproj_ref,
                            out_ref, qkv_s):
    # x_ref:     (1, S, C)  fp32  -- full spatial extent, resident per batch
    # wqkv_ref:  (C, 3C)    bf16  (attention scale pre-folded into the Q columns)
    # bqkv_ref:  (1, 3C)    fp32
    # wn_ref:    (C, C)     bf16
    # bn_ref:    (1, C)     fp32
    # gproj_ref: (C, C)     fp32  group-mean projector: 1/(S*cg) within a group
    # out_ref:   (1, TQ, C) fp32  -- one query tile
    # qkv_s:     (S, 3C)    bf16 scratch, persistent across the query-tile axis
    t = pl.program_id(1)
    S, C = x_ref.shape[1], x_ref.shape[2]
    TQ = out_ref.shape[1]
    n_chunks = S // TQ

    # ---- per-batch pre-pass (t == 0): GroupNorm + fused QKV, chunked over S ----
    @pl.when(t == 0)
    def _():
        # Pass 1: per-channel sum / sum-of-squares accumulated in TQ-row chunks,
        # so only O(TQ*C) fp32 temporaries are live at any point.
        def stats_body(i, carry):
            cs, ss = carry
            r0 = pl.multiple_of(i * TQ, TQ)
            xc = x_ref[0, pl.ds(r0, TQ), :]                  # (TQ, C) fp32
            cs = cs + jnp.sum(xc, axis=0, keepdims=True)
            ss = ss + jnp.sum(xc * xc, axis=0, keepdims=True)
            return cs, ss

        zeros = jnp.zeros((1, C), jnp.float32)
        colsum, sqsum = jax.lax.fori_loop(0, n_chunks, stats_body, (zeros, zeros))

        # Group statistics via the precomputed projector (no iota/compare work).
        mean_c = jnp.dot(colsum, gproj_ref[...], preferred_element_type=jnp.float32)
        ex2_c = jnp.dot(sqsum, gproj_ref[...], preferred_element_type=jnp.float32)
        var_c = jnp.maximum(ex2_c - mean_c * mean_c, 0.0)    # biased, like PyTorch
        rstd_c = jax.lax.rsqrt(var_c + EPS)                  # (1, C) fp32

        # Pass 2: normalize chunk -> bf16 -> fused QKV matmul -> bf16 scratch.
        # No (S, 3C) fp32 intermediate, no per-slice q/k/v copies.
        @pl.loop(0, n_chunks)
        def _(i):
            r0 = pl.multiple_of(i * TQ, TQ)
            xc = x_ref[0, pl.ds(r0, TQ), :]                  # (TQ, C) fp32
            h = ((xc - mean_c) * rstd_c).astype(jnp.bfloat16)
            qkv = jnp.dot(h, wqkv_ref[...],
                          preferred_element_type=jnp.float32) + bqkv_ref[...]
            qkv_s[pl.ds(r0, TQ), :] = qkv.astype(jnp.bfloat16)

    # ---- per-query-tile attention ----
    row0 = pl.multiple_of(t * TQ, TQ)
    # Column slices are 128-lane aligned for C a multiple of 128.
    qt = qkv_s[pl.ds(row0, TQ), pl.ds(0, C)]                 # (TQ, C) bf16 (scaled)
    k = qkv_s[:, pl.ds(C, C)]                                # (S, C)  bf16
    v = qkv_s[:, pl.ds(2 * C, C)]                            # (S, C)  bf16

    # Logits without materializing k.T: contract the shared C axis directly.
    logits = jax.lax.dot_general(
        qt, k, dimension_numbers=(((1,), (1,)), ((), ())),
        preferred_element_type=jnp.float32)                  # (TQ, S) fp32

    # Softmax in fp32; denominator deferred until after p @ v (EUP reciprocal).
    m = jnp.max(logits, axis=-1, keepdims=True)
    p = jnp.exp(logits - m)
    l = jnp.sum(p, axis=-1, keepdims=True)                   # (TQ, 1)

    attn = jnp.dot(p.astype(jnp.bfloat16), v,
                   preferred_element_type=jnp.float32)       # (TQ, C) fp32
    attn = attn * pl.reciprocal(l, approx=True)

    # Output Nin projection + residual (residual add in fp32).
    proj = jnp.dot(attn.astype(jnp.bfloat16), wn_ref[...],
                   preferred_element_type=jnp.float32) + bn_ref[...]
    out_ref[0] = x_ref[0, pl.ds(row0, TQ), :] + proj


def _pick_tq(S, target):
    """Largest query-tile size <= target that divides S and is a multiple of 8."""
    if S % 8 != 0:
        return S
    tq = min(int(target), S)
    tq -= tq % 8
    while tq > 8 and S % tq != 0:
        tq -= 8
    if tq <= 0 or S % tq != 0:
        return S
    return tq


def _tpu_vmem_capacity_bytes():
    """Physical VMEM per TensorCore; conservative fallback if the query fails."""
    try:
        return int(pltpu.get_tpu_info().vmem_capacity_bytes)
    except Exception:
        return 64 * 1024 * 1024      # assume a v7x-sized (64 MiB) part


def _vmem_limit_bytes(S, TQ, C, vmem_cap):
    est = (
        2 * S * C * 4                          # x block (double-buffered fp32)
        + 2 * TQ * C * 4                       # out block (double-buffered fp32)
        + (3 * C * C + C * C) * 2              # bf16 weights (single-buffered)
        + C * C * 4 + 4 * C * 4                # fp32 projector + biases
        + 3 * S * C * 2                        # (S, 3C) bf16 qkv scratch
        + 10 * TQ * S                          # logits/p fp32 + bf16 copy
        + 24 * TQ * C                          # chunked pre-pass temporaries
    )
    # Generation-aware ceiling: ~50 MiB on 64 MiB parts (v7x), ~100 MiB on
    # 128 MiB parts (v5e/v6e) -- leaves headroom for compiler scratch.
    ceiling = int(vmem_cap * 0.78)
    return int(min(max(2 * est, 32 * 1024 * 1024), ceiling))


def _const_spec(shape):
    """BlockSpec for an operand whose index map is constant across the grid.
    Single-buffered (pl.Buffered(1)) -- double-buffering constants just wastes
    VMEM.  Falls back to the default if this JAX build lacks pipeline_mode."""
    index_map = lambda b, t: (0,) * len(shape)
    try:
        return pl.BlockSpec(shape, index_map, pipeline_mode=pl.Buffered(1))
    except (TypeError, AttributeError):
        return pl.BlockSpec(shape, index_map)


def attention_block(x_nchw, params, *, tq_target=None):
    """x_nchw: (B, C, H, W) float32. params: dict of Wq,bq,Wk,bk,Wv,bv,Wn,bn."""
    B, C, H, W = x_nchw.shape
    assert C % NUM_GROUPS == 0, "group_norm with 32 groups requires C % 32 == 0"
    S = H * W

    vmem_cap = _tpu_vmem_capacity_bytes()
    if tq_target is None:
        # Bigger tiles on 128 MiB parts (v5e/v6e) -> fewer grid steps, longer
        # MXU streams; tighter tiles on v7x's 64 MiB.
        tq_target = 512 if vmem_cap >= (96 << 20) else 256
    TQ = _pick_tq(S, tq_target)
    n_tq = S // TQ

    # Glue: NCHW -> (B, S, C) with channels on the lane axis.
    x = jnp.transpose(x_nchw, (0, 2, 3, 1)).reshape(B, S, C).astype(jnp.float32)

    # Fold attention scale into Q weights/bias; fuse QKV; weights as bf16.
    scale = float(C) ** -0.5
    w_qkv = jnp.concatenate(
        [params["Wq"] * scale, params["Wk"], params["Wv"]], axis=1
    ).astype(jnp.bfloat16)                                        # (C, 3C)
    b_qkv = jnp.concatenate(
        [params["bq"] * scale, params["bk"], params["bv"]]
    ).reshape(1, 3 * C).astype(jnp.float32)
    w_n = params["Wn"].astype(jnp.bfloat16)
    b_n = params["bn"].reshape(1, C).astype(jnp.float32)

    # Group-mean projector: colsum @ P == per-channel group mean, when colsum is
    # the per-channel sum over all S spatial positions.  Built once on the host.
    cg = C // NUM_GROUPS
    gidx = jnp.arange(C, dtype=jnp.int32) // cg
    g_proj = (gidx[:, None] == gidx[None, :]).astype(jnp.float32) / float(S * cg)

    cost = pl.CostEstimate(
        flops=int(B * (8 * S * C * C + 4 * S * S * C)),
        transcendentals=int(B * S * S),
        bytes_accessed=int(2 * B * S * C * 4 + 4 * C * C * 2 + C * C * 4 + 4 * C * 4),
    )

    out = pl.pallas_call(
        _attention_block_kernel,
        out_shape=jax.ShapeDtypeStruct((B, S, C), jnp.float32),
        grid_spec=pltpu.PrefetchScalarGridSpec(
            num_scalar_prefetch=0,
            grid=(B, n_tq),
            in_specs=[
                # x: resident per batch; kept double-buffered so the next
                # batch's block prefetches under the last query tiles.
                pl.BlockSpec((1, S, C), lambda b, t: (b, 0, 0)),
                _const_spec((C, 3 * C)),       # fused W_qkv (bf16)
                _const_spec((1, 3 * C)),       # fused b_qkv (fp32)
                _const_spec((C, C)),           # Wn (bf16)
                _const_spec((1, C)),           # bn (fp32)
                _const_spec((C, C)),           # group-mean projector (fp32)
            ],
            out_specs=pl.BlockSpec((1, TQ, C), lambda b, t: (b, t, 0)),
            scratch_shapes=[
                pltpu.VMEM((S, 3 * C), jnp.bfloat16),   # fused q|k|v scratch
            ],
        ),
        compiler_params=pltpu.CompilerParams(
            dimension_semantics=("parallel", "arbitrary"),
            vmem_limit_bytes=_vmem_limit_bytes(S, TQ, C, vmem_cap),
        ),
        cost_estimate=cost,
    )(x, w_qkv, b_qkv, w_n, b_n, g_proj)

    # Glue: (B, S, C) -> NCHW.
    return jnp.transpose(out.reshape(B, H, W, C), (0, 3, 1, 2))


def attention_block_ref(x, params):
    """Pure-JAX fp32 reference mirroring the PyTorch forward exactly."""
    B, C, H, W = x.shape
    xg = x.reshape(B, NUM_GROUPS, C // NUM_GROUPS, H, W)
    mean = xg.mean(axis=(2, 3, 4), keepdims=True)
    var = xg.var(axis=(2, 3, 4), keepdims=True)  # biased, like PyTorch
    h = (xg - mean) / jnp.sqrt(var + EPS)
    h = h.reshape(B, C, H, W)

    def nin(t, Wm, b):
        return jnp.einsum('bchw,co->bohw', t, Wm) + b[None, :, None, None]

    q = nin(h, params["Wq"], params["bq"])
    k = nin(h, params["Wk"], params["bk"])
    v = nin(h, params["Wv"], params["bv"])
    w = jnp.einsum('bchw,bcHW->bhwHW', q, k) * (float(C) ** -0.5)
    w = w.reshape(B, H, W, H * W)
    w = jax.nn.softmax(w, axis=-1)
    w = w.reshape(B, H, W, H, W)
    h = jnp.einsum('bhwHW,bcHW->bchw', w, v)
    h = nin(h, params["Wn"], params["bn"])
    return x + h


def init_params(key, ch):
    # Nin(ch, ch) has weight (ch, ch) and bias (ch,).  The module's final
    # projection uses scale=0.0 init; a small nonzero deterministic init is used
    # here so the attention path is numerically exercised.
    ks = jax.random.split(key, 8)
    std = 1.0 / jnp.sqrt(jnp.float32(ch))
    return {
        "Wq": jax.random.normal(ks[0], (ch, ch), jnp.float32) * std,
        "bq": jax.random.normal(ks[1], (ch,), jnp.float32) * 0.01,
        "Wk": jax.random.normal(ks[2], (ch, ch), jnp.float32) * std,
        "bk": jax.random.normal(ks[3], (ch,), jnp.float32) * 0.01,
        "Wv": jax.random.normal(ks[4], (ch, ch), jnp.float32) * std,
        "bv": jax.random.normal(ks[5], (ch,), jnp.float32) * 0.01,
        "Wn": jax.random.normal(ks[6], (ch, ch), jnp.float32) * (0.1 * std),
        "bn": jax.random.normal(ks[7], (ch,), jnp.float32) * 0.01,
    }


if __name__ == "__main__":
    key = jax.random.PRNGKey(0)
    k_x, k_p = jax.random.split(key)

    # C must be a multiple of 32 for group_norm(32); C=128 keeps the lane axis full.
    B, C, H, W = 2, 128, 8, 8            # S = 64, TQ = 32 -> grid (2, 2)
    x = jax.random.normal(k_x, (B, C, H, W), jnp.float32)
    params = init_params(k_p, C)

    # tq_target=32 forces multiple query tiles + multiple pre-pass chunks so the
    # pl.when(t==0) gating and the chunked GroupNorm/QKV path are exercised.
    fwd = jax.jit(lambda inp: attention_block(inp, params, tq_target=32))
    out = jax.block_until_ready(fwd(x))

    ref = attention_block_ref(x, params)
    assert out.shape == x.shape
    max_err = float(jnp.max(jnp.abs(out - ref)))
    # bf16 matmul operands (fp32 accumulation) vs. an fp32 reference: allow bf16-level error.
    assert jnp.allclose(out, ref, atol=3e-2, rtol=3e-2), max_err
    print("KERNEL_OK")
</pallas_src>

<mosaic_0001>
module attributes {stable_mosaic.version = 11 : i64} {
  func.func @_attention_block_kernel(%arg0: i32, %arg1: i32, %arg2: memref<1x64x128xf32, #tpu.memory_space<vmem>>, %arg3: memref<128x384xbf16, #tpu.memory_space<vmem>>, %arg4: memref<1x384xf32, #tpu.memory_space<vmem>>, %arg5: memref<128x128xbf16, #tpu.memory_space<vmem>>, %arg6: memref<1x128xf32, #tpu.memory_space<vmem>>, %arg7: memref<128x128xf32, #tpu.memory_space<vmem>>, %arg8: memref<1x32x128xf32, #tpu.memory_space<vmem>>, %arg9: memref<64x384xbf16, #tpu.memory_space<vmem>>) attributes {dimension_semantics = [#tpu.dimension_semantics<parallel>, #tpu.dimension_semantics<arbitrary>], iteration_bounds = array<i64: 2, 2>, scalar_prefetch = 0 : i64, scratch_operands = 1 : i64, tpu.core_type = #tpu.core_type<tc>, window_params = [{transform_indices = @transform_0, window_bounds = array<i64: 1, 64, 128>}, {pipeline_mode = #tpu.pipeline_mode<synchronous>, transform_indices = @transform_1, window_bounds = array<i64: 128, 384>}, {pipeline_mode = #tpu.pipeline_mode<synchronous>, transform_indices = @transform_2, window_bounds = array<i64: 1, 384>}, {pipeline_mode = #tpu.pipeline_mode<synchronous>, transform_indices = @transform_3, window_bounds = array<i64: 128, 128>}, {pipeline_mode = #tpu.pipeline_mode<synchronous>, transform_indices = @transform_4, window_bounds = array<i64: 1, 128>}, {pipeline_mode = #tpu.pipeline_mode<synchronous>, transform_indices = @transform_5, window_bounds = array<i64: 128, 128>}, {transform_indices = @transform_6, window_bounds = array<i64: 1, 32, 128>}]} {
    %c0_i32 = arith.constant 0 : i32
    %0 = arith.cmpi eq, %arg1, %c0_i32 : i32
    %1 = arith.extui %0 : i1 to i32
    %c0_i32_0 = arith.constant 0 : i32
    %2 = arith.cmpi ne, %1, %c0_i32_0 : i32
    scf.if %2 {
      %cst_16 = arith.constant 0.000000e+00 : f32
      %35 = vector.broadcast %cst_16 : f32 to vector<1x128xf32>
      %c0_i32_17 = arith.constant 0 : i32
      %c2_i32 = arith.constant 2 : i32
      %36 = arith.addi %c0_i32_17, %c2_i32 : i32
      %c1_i32 = arith.constant 1 : i32
      %37:2 = scf.for %arg10 = %c0_i32_17 to %36 step %c1_i32 iter_args(%arg11 = %35, %arg12 = %35) -> (vector<1x128xf32>, vector<1x128xf32>)  : i32 {
        %c32_i32_31 = arith.constant 32 : i32
        %50 = arith.muli %arg10, %c32_i32_31 : i32
        %51 = tpu.assume_multiple %50, 32 : i32
        %c0_32 = arith.constant 0 : index
        %52 = arith.index_cast %51 : i32 to index
        %c0_33 = arith.constant 0 : index
        %53 = vector.load %arg2[%c0_32, %52, %c0_33] : memref<1x64x128xf32, #tpu.memory_space<vmem>>, vector<1x32x128xf32>
        %54 = vector.shape_cast %53 : vector<1x32x128xf32> to vector<32x128xf32>
        %cst_34 = arith.constant dense<0.000000e+00> : vector<128xf32>
        %55 = vector.multi_reduction <add>, %54, %cst_34 [0] : vector<32x128xf32> to vector<128xf32>
        %56 = vector.shape_cast %55 : vector<128xf32> to vector<1x128xf32>
        %57 = arith.addf %arg11, %56 : vector<1x128xf32>
        %58 = arith.mulf %54, %54 : vector<32x128xf32>
        %cst_35 = arith.constant dense<0.000000e+00> : vector<128xf32>
        %59 = vector.multi_reduction <add>, %58, %cst_35 [0] : vector<32x128xf32> to vector<128xf32>
        %60 = vector.shape_cast %59 : vector<128xf32> to vector<1x128xf32>
        %61 = arith.addf %arg12, %60 : vector<1x128xf32>
        scf.yield %57, %61 : vector<1x128xf32>, vector<1x128xf32>
      }
      %c2_i32_18 = arith.constant 2 : i32
      %c0_19 = arith.constant 0 : index
      %c0_20 = arith.constant 0 : index
      %38 = vector.load %arg7[%c0_19, %c0_20] : memref<128x128xf32, #tpu.memory_space<vmem>>, vector<128x128xf32>
      %cst_21 = arith.constant dense<0.000000e+00> : vector<1x128xf32>
      %39 = tpu.matmul %37#0, %38, %cst_21 {dimension_numbers = #tpu.dot_dimension_numbers<[1], [0], [0], [1], [0, 0, 1, 1], [], []>} : vector<1x128xf32>, vector<128x128xf32>, vector<1x128xf32> -> vector<1x128xf32>
      %c0_22 = arith.constant 0 : index
      %c0_23 = arith.constant 0 : index
      %40 = vector.load %arg7[%c0_22, %c0_23] : memref<128x128xf32, #tpu.memory_space<vmem>>, vector<128x128xf32>
      %cst_24 = arith.constant dense<0.000000e+00> : vector<1x128xf32>
      %41 = tpu.matmul %37#1, %40, %cst_24 {dimension_numbers = #tpu.dot_dimension_numbers<[1], [0], [0], [1], [0, 0, 1, 1], [], []>} : vector<1x128xf32>, vector<128x128xf32>, vector<1x128xf32> -> vector<1x128xf32>
      %42 = arith.mulf %39, %39 : vector<1x128xf32>
      %43 = arith.subf %41, %42 : vector<1x128xf32>
      %cst_25 = arith.constant 0.000000e+00 : f32
      %44 = vector.broadcast %cst_25 : f32 to vector<1x128xf32>
      %45 = arith.maximumf %43, %44 : vector<1x128xf32>
      %cst_26 = arith.constant 9.99999974E-6 : f32
      %46 = vector.broadcast %cst_26 : f32 to vector<1x128xf32>
      %47 = arith.addf %45, %46 : vector<1x128xf32>
      %48 = math.rsqrt %47 : vector<1x128xf32>
      %c0_i32_27 = arith.constant 0 : i32
      %c2_i32_28 = arith.constant 2 : i32
      %49 = arith.addi %c0_i32_27, %c2_i32_28 : i32
      %c1_i32_29 = arith.constant 1 : i32
      scf.for %arg10 = %c0_i32_27 to %49 step %c1_i32_29  : i32 {
        %c1_i32_31 = arith.constant 1 : i32
        %50 = arith.muli %arg10, %c1_i32_31 : i32
        %c0_i32_32 = arith.constant 0 : i32
        %51 = arith.addi %c0_i32_32, %50 : i32
        %c32_i32_33 = arith.constant 32 : i32
        %52 = arith.muli %51, %c32_i32_33 : i32
        %53 = tpu.assume_multiple %52, 32 : i32
        %c0_34 = arith.constant 0 : index
        %54 = arith.index_cast %53 : i32 to index
        %c0_35 = arith.constant 0 : index
        %55 = vector.load %arg2[%c0_34, %54, %c0_35] : memref<1x64x128xf32, #tpu.memory_space<vmem>>, vector<1x32x128xf32>
        %56 = vector.shape_cast %55 : vector<1x32x128xf32> to vector<32x128xf32>
        %57 = vector.broadcast %39 : vector<1x128xf32> to vector<32x128xf32>
        %58 = arith.subf %56, %57 : vector<32x128xf32>
        %59 = vector.broadcast %48 : vector<1x128xf32> to vector<32x128xf32>
        %60 = arith.mulf %58, %59 : vector<32x128xf32>
        %61 = arith.truncf %60 : vector<32x128xf32> to vector<32x128xbf16>
        %c0_36 = arith.constant 0 : index
        %c0_37 = arith.constant 0 : index
        %62 = vector.load %arg3[%c0_36, %c0_37] : memref<128x384xbf16, #tpu.memory_space<vmem>>, vector<128x384xbf16>
        %cst_38 = arith.constant dense<0.000000e+00> : vector<32x384xf32>
        %63 = tpu.matmul %61, %62, %cst_38 {dimension_numbers = #tpu.dot_dimension_numbers<[1], [0], [0], [1], [0, 0, 1, 1], [], []>} : vector<32x128xbf16>, vector<128x384xbf16>, vector<32x384xf32> -> vector<32x384xf32>
        %c0_39 = arith.constant 0 : index
        %c0_40 = arith.constant 0 : index
        %64 = vector.load %arg4[%c0_39, %c0_40] : memref<1x384xf32, #tpu.memory_space<vmem>>, vector<1x384xf32>
        %65 = vector.broadcast %64 : vector<1x384xf32> to vector<32x384xf32>
        %66 = arith.addf %63, %65 : vector<32x384xf32>
        %67 = arith.truncf %66 : vector<32x384xf32> to vector<32x384xbf16>
        %68 = arith.index_cast %53 : i32 to index
        %c0_41 = arith.constant 0 : index
        %69 = vector.load %arg9[%68, %c0_41] : memref<64x384xbf16, #tpu.memory_space<vmem>>, vector<32x384xbf16>
        tpu.vector_store %arg9[%68, %c0_41], %67 {strides = array<i32>} : memref<64x384xbf16, #tpu.memory_space<vmem>>, vector<32x384xbf16>,
      }
      %c2_i32_30 = arith.constant 2 : i32
    } else {
    }
    %c32_i32 = arith.constant 32 : i32
    %3 = arith.muli %arg1, %c32_i32 : i32
    %4 = tpu.assume_multiple %3, 32 : i32
    %5 = arith.index_cast %4 : i32 to index
    %c0 = arith.constant 0 : index
    %6 = vector.load %arg9[%5, %c0] : memref<64x384xbf16, #tpu.memory_space<vmem>>, vector<32x128xbf16>
    %c0_1 = arith.constant 0 : index
    %c128 = arith.constant 128 : index
    %7 = vector.load %arg9[%c0_1, %c128] : memref<64x384xbf16, #tpu.memory_space<vmem>>, vector<64x128xbf16>
    %c0_2 = arith.constant 0 : index
    %c256 = arith.constant 256 : index
    %8 = vector.load %arg9[%c0_2, %c256] : memref<64x384xbf16, #tpu.memory_space<vmem>>, vector<64x128xbf16>
    %cst = arith.constant dense<0.000000e+00> : vector<32x64xf32>
    %9 = tpu.matmul %6, %7, %cst {dimension_numbers = #tpu.dot_dimension_numbers<[1], [1], [0], [0], [0, 0, 1, 0], [], []>} : vector<32x128xbf16>, vector<64x128xbf16>, vector<32x64xf32> -> vector<32x64xf32>
    %cst_3 = arith.constant dense<0xFF800000> : vector<32xf32>
    %10 = vector.multi_reduction <maximumf>, %9, %cst_3 [1] : vector<32x64xf32> to vector<32xf32>
    %11 = vector.shape_cast %10 : vector<32xf32> to vector<32x1xf32>
    %12 = vector.broadcast %11 : vector<32x1xf32> to vector<32x64xf32>
    %13 = arith.subf %9, %12 : vector<32x64xf32>
    %14 = math.exp %13 : vector<32x64xf32>
    %cst_4 = arith.constant dense<0.000000e+00> : vector<32xf32>
    %15 = vector.multi_reduction <add>, %14, %cst_4 [1] : vector<32x64xf32> to vector<32xf32>
    %16 = vector.shape_cast %15 : vector<32xf32> to vector<32x1xf32>
    %17 = arith.truncf %14 : vector<32x64xf32> to vector<32x64xbf16>
    %cst_5 = arith.constant dense<0.000000e+00> : vector<32x128xf32>
    %18 = tpu.matmul %17, %8, %cst_5 {dimension_numbers = #tpu.dot_dimension_numbers<[1], [0], [0], [1], [0, 0, 1, 1], [], []>} : vector<32x64xbf16>, vector<64x128xbf16>, vector<32x128xf32> -> vector<32x128xf32>
    %19 = tpu.reciprocal %16 {approx = true} : vector<32x1xf32> -> vector<32x1xf32>
    %20 = vector.broadcast %19 : vector<32x1xf32> to vector<32x128xf32>
    %21 = arith.mulf %18, %20 : vector<32x128xf32>
    %22 = arith.truncf %21 : vector<32x128xf32> to vector<32x128xbf16>
    %c0_6 = arith.constant 0 : index
    %c0_7 = arith.constant 0 : index
    %23 = vector.load %arg5[%c0_6, %c0_7] : memref<128x128xbf16, #tpu.memory_space<vmem>>, vector<128x128xbf16>
    %cst_8 = arith.constant dense<0.000000e+00> : vector<32x128xf32>
    %24 = tpu.matmul %22, %23, %cst_8 {dimension_numbers = #tpu.dot_dimension_numbers<[1], [0], [0], [1], [0, 0, 1, 1], [], []>} : vector<32x128xbf16>, vector<128x128xbf16>, vector<32x128xf32> -> vector<32x128xf32>
    %c0_9 = arith.constant 0 : index
    %c0_10 = arith.constant 0 : index
    %25 = vector.load %arg6[%c0_9, %c0_10] : memref<1x128xf32, #tpu.memory_space<vmem>>, vector<1x128xf32>
    %26 = vector.broadcast %25 : vector<1x128xf32> to vector<32x128xf32>
    %27 = arith.addf %24, %26 : vector<32x128xf32>
    %c0_11 = arith.constant 0 : index
    %28 = arith.index_cast %4 : i32 to index
    %c0_12 = arith.constant 0 : index
    %29 = vector.load %arg2[%c0_11, %28, %c0_12] : memref<1x64x128xf32, #tpu.memory_space<vmem>>, vector<1x32x128xf32>
    %30 = vector.shape_cast %29 : vector<1x32x128xf32> to vector<32x128xf32>
    %31 = arith.addf %30, %27 : vector<32x128xf32>
    %c0_13 = arith.constant 0 : index
    %c0_14 = arith.constant 0 : index
    %c0_15 = arith.constant 0 : index
    %32 = vector.load %arg8[%c0_13, %c0_14, %c0_15] : memref<1x32x128xf32, #tpu.memory_space<vmem>>, vector<1x32x128xf32>
    %33 = vector.shape_cast %32 : vector<1x32x128xf32> to vector<32x128xf32>
    %34 = vector.shape_cast %31 : vector<32x128xf32> to vector<1x32x128xf32>
    tpu.vector_store %arg8[%c0_13, %c0_14, %c0_15], %34 {strides = array<i32>} : memref<1x32x128xf32, #tpu.memory_space<vmem>>, vector<1x32x128xf32>,
    return
  }
  func.func @transform_0(%arg0: i32, %arg1: i32) -> (i32, i32, i32) {
    %c0_i32 = arith.constant 0 : i32
    %c0_i32_0 = arith.constant 0 : i32
    %c0_i32_1 = arith.constant 0 : i32
    return %arg0, %c0_i32, %c0_i32_0 : i32, i32, i32
  }
  func.func @transform_1(%arg0: i32, %arg1: i32) -> (i32, i32) {
    %c0_i32 = arith.constant 0 : i32
    %c0_i32_0 = arith.constant 0 : i32
    %c0_i32_1 = arith.constant 0 : i32
    return %c0_i32, %c0_i32_0 : i32, i32
  }
  func.func @transform_2(%arg0: i32, %arg1: i32) -> (i32, i32) {
    %c0_i32 = arith.constant 0 : i32
    %c0_i32_0 = arith.constant 0 : i32
    %c0_i32_1 = arith.constant 0 : i32
    return %c0_i32, %c0_i32_0 : i32, i32
  }
  func.func @transform_3(%arg0: i32, %arg1: i32) -> (i32, i32) {
    %c0_i32 = arith.constant 0 : i32
    %c0_i32_0 = arith.constant 0 : i32
    %c0_i32_1 = arith.constant 0 : i32
    return %c0_i32, %c0_i32_0 : i32, i32
  }
  func.func @transform_4(%arg0: i32, %arg1: i32) -> (i32, i32) {
    %c0_i32 = arith.constant 0 : i32
    %c0_i32_0 = arith.constant 0 : i32
    %c0_i32_1 = arith.constant 0 : i32
    return %c0_i32, %c0_i32_0 : i32, i32
  }
  func.func @transform_5(%arg0: i32, %arg1: i32) -> (i32, i32) {
    %c0_i32 = arith.constant 0 : i32
    %c0_i32_0 = arith.constant 0 : i32
    %c0_i32_1 = arith.constant 0 : i32
    return %c0_i32, %c0_i32_0 : i32, i32
  }
  func.func @transform_6(%arg0: i32, %arg1: i32) -> (i32, i32, i32) {
    %c0_i32 = arith.constant 0 : i32
    %c0_i32_0 = arith.constant 0 : i32
    return %arg0, %arg1, %c0_i32 : i32, i32, i32
  }
}

</mosaic_0001>

<llo_original>
// kernel: _lambda_.1
$region0: #{_lambda_.1}
  #allocation0 [shape = 'u32[]', space=smem, size = 0x4, offset = 0x4, fixed_abs, tag = 'smem constant byte address 0x4 - core index']
  #allocation1 [shape = 'u32[144,128]{1,0:T(1,128)}', space=vmem, size = 0x12000, scoped, tag = 'internal scratch']
  #allocation2 [shape = 'bf16[64,384]{1,0:T(16,128)(2,1)}', space=vmem, size = 0xc000, scoped, tag = 'scratch operand']
  %s0 = inlined_call_operand.vmem [shape: f32[2,64,128], index: 0, kind: input, shape index: {}]
  %s1 = inlined_call_operand.vmem [shape: bf16[128,384], index: 1, kind: input, shape index: {}]
  %s2 = inlined_call_operand.vmem [shape: f32[1,384], index: 2, kind: input, shape index: {}]
  %s3 = inlined_call_operand.vmem [shape: bf16[128,128], index: 3, kind: input, shape index: {}]
  %s4 = inlined_call_operand.vmem [shape: f32[1,128], index: 4, kind: input, shape index: {}]
  %s5 = inlined_call_operand.vmem [shape: f32[128,128], index: 5, kind: input, shape index: {}]
  %s6 = inlined_call_operand.hbm [shape: f32[2,64,128], index: 6, kind: output, shape index: {}]
  %s7 = sld [smem:[#allocation0]]
  $region75: #{_lambda_.1} parent=0
    _
  %s9 = ssub.s32 1, %s7
  %s10 = scalar_select 0, %s9, %s7
  $region1: #{_lambda_.1} parent=0
    #allocation3 [shape = 'u8[32768]{0}', space=vmem, size = 0x8000, scoped, tag = 'output window, operand 0']
    #allocation4 [shape = 's32[2]{0}', space=sflag, size = 0x8, scoped, tag = 'scoped memory for _lambda_.1']
    %11 = vsyncpa [#allocation4], 0
    %s12 = scalar_lea.sflag [#allocation4], 1
    %13 = vsyncpa %s12, 0
    loop: start=0, step=1, limit=6
    $region2: #{_lambda_.1} parent=1 // loop_pre_header
      _
    $region3: #{_lambda_.1} parent=1 // loop_header
      %s15 = sphi 0, %s19
      %p16 = scmp.ge.s32.totalorder %s15, 6
      %s22 = sphi 0, %s34
      %s23 = sphi 0, %s30
      %s24 = sphi 0, %s22
      %s25 = sphi 0, %s23
      %s26 = sphi 0, %s24
      %s27 = sphi 0, %s25
      %s37 = sphi 0, %s39
      %s40 = sphi 0, %s37
      %s41 = sphi 0, %s40
      %s57 = sphi 0, %s41
      %s61 = sphi 0, %s61
      %s63 = sphi 0, %s61
      %s64 = sphi 0, %s63
      %s78 = sphi 0, %s64
      %s82 = sphi 0, %s82
      %s84 = sphi 0, %s82
      %s85 = sphi 0, %s84
      %s99 = sphi 0, %s85
      %s103 = sphi 0, %s103
      %s105 = sphi 0, %s103
      %s106 = sphi 0, %s105
      %s120 = sphi 0, %s106
      %s124 = sphi 0, %s124
      %s126 = sphi 0, %s124
      %s127 = sphi 0, %s126
      %s141 = sphi 0, %s127
      %s145 = sphi 0, %s145
      %s147 = sphi 0, %s145
      %s148 = sphi 0, %s147
      %s162 = sphi 0, %s148
      %s170 = sphi 0, %s172
      %s173 = sphi 0, %s170
      %s174 = sphi 0, %s173
      %s190 = sphi 0, %s174
    $region4: #{_lambda_.1} parent=1 // loop_header_branch
      %18 = sbr.rel (%p16) target = $region8
    $region5: #{_lambda_.1} parent=1 // loop_body
      %s20 = ssub.s32 %s15, 1
      %s21 = ssub.s32 %s15, 2
      %s28 = sadd.s32 1, %s23
      %p29 = scmp.ge.s32.totalorder %s28, 2
      %s30 = scalar_select %p29, 0, %s28
      %s31 = sadd.s32 1, %s22
      %s32 = scalar_select %p29, %s31, %s22
      %p33 = scmp.ge.s32.totalorder %s32, 2
      %s34 = scalar_select %p33, 0, %s32
      %s35 = ssub.s32 %s22, %s34
      %p36 = scmp.eq.s32.totalorder %s35, 0
      %s38 = sadd.s32 %s37, 1
      %s39 = scalar_select %p36, %s37, %s38
      %p42 = pneg %p36
      %p43 = scmp.eq.s32.totalorder %s15, 3
      %p44 = por %p42, %p43
      %p45 = scmp.ne.s32.totalorder %s37, %s40
      %p46 = scmp.eq.s32.totalorder %s15, 0
      %p47 = por %p45, %p46
      %p48 = scmp.ne.s32.totalorder %s37, %s40
      %p49 = scmp.eq.s32.totalorder %s20, 3
      %p50 = por %p48, %p49
      %p51 = scmp.ne.s32.totalorder %s40, %s41
      %p52 = scmp.eq.s32.totalorder %s20, 0
      %p53 = por %p51, %p52
      %p54 = scmp.ne.s32.totalorder %s40, %s41
      %p55 = scmp.eq.s32.totalorder %s21, 3
      %p56 = por %p54, %p55
      %p58 = scmp.ne.s32.totalorder %s41, %s57
      %p59 = scmp.eq.s32.totalorder %s21, 0
      %p60 = por %p58, %p59
      %s62 = sadd.s32 %s61, 1
      %p65 = scmp.eq.s32.totalorder %s15, 3
      %p66 = scmp.ne.s32.totalorder %s61, %s63
      %p67 = scmp.eq.s32.totalorder %s15, 0
      %p68 = por %p66, %p67
      %p69 = scmp.ne.s32.totalorder %s61, %s63
      %p70 = scmp.eq.s32.totalorder %s20, 3
      %p71 = por %p69, %p70
      %p72 = scmp.ne.s32.totalorder %s63, %s64
      %p73 = scmp.eq.s32.totalorder %s20, 0
      %p74 = por %p72, %p73
      %p75 = scmp.ne.s32.totalorder %s63, %s64
      %p76 = scmp.eq.s32.totalorder %s21, 3
      %p77 = por %p75, %p76
      %p79 = scmp.ne.s32.totalorder %s64, %s78
      %p80 = scmp.eq.s32.totalorder %s21, 0
      %p81 = por %p79, %p80
      %s83 = sadd.s32 %s82, 1
      %p86 = scmp.eq.s32.totalorder %s15, 3
      %p87 = scmp.ne.s32.totalorder %s82, %s84
      %p88 = scmp.eq.s32.totalorder %s15, 0
      %p89 = por %p87, %p88
      %p90 = scmp.ne.s32.totalorder %s82, %s84
      %p91 = scmp.eq.s32.totalorder %s20, 3
      %p92 = por %p90, %p91
      %p93 = scmp.ne.s32.totalorder %s84, %s85
      %p94 = scmp.eq.s32.totalorder %s20, 0
      %p95 = por %p93, %p94
      %p96 = scmp.ne.s32.totalorder %s84, %s85
      %p97 = scmp.eq.s32.totalorder %s21, 3
      %p98 = por %p96, %p97
      %p100 = scmp.ne.s32.totalorder %s85, %s99
      %p101 = scmp.eq.s32.totalorder %s21, 0
      %p102 = por %p100, %p101
      %s104 = sadd.s32 %s103, 1
      %p107 = scmp.eq.s32.totalorder %s15, 3
      %p108 = scmp.ne.s32.totalorder %s103, %s105
      %p109 = scmp.eq.s32.totalorder %s15, 0
      %p110 = por %p108, %p109
      %p111 = scmp.ne.s32.totalorder %s103, %s105
      %p112 = scmp.eq.s32.totalorder %s20, 3
      %p113 = por %p111, %p112
      %p114 = scmp.ne.s32.totalorder %s105, %s106
      %p115 = scmp.eq.s32.totalorder %s20, 0
      %p116 = por %p114, %p115
      %p117 = scmp.ne.s32.totalorder %s105, %s106
      %p118 = scmp.eq.s32.totalorder %s21, 3
      %p119 = por %p117, %p118
      %p121 = scmp.ne.s32.totalorder %s106, %s120
      %p122 = scmp.eq.s32.totalorder %s21, 0
      %p123 = por %p121, %p122
      %s125 = sadd.s32 %s124, 1
      %p128 = scmp.eq.s32.totalorder %s15, 3
      %p129 = scmp.ne.s32.totalorder %s124, %s126
      %p130 = scmp.eq.s32.totalorder %s15, 0
      %p131 = por %p129, %p130
      %p132 = scmp.ne.s32.totalorder %s124, %s126
      %p133 = scmp.eq.s32.totalorder %s20, 3
      %p134 = por %p132, %p133
      %p135 = scmp.ne.s32.totalorder %s126, %s127
      %p136 = scmp.eq.s32.totalorder %s20, 0
      %p137 = por %p135, %p136
      %p138 = scmp.ne.s32.totalorder %s126, %s127
      %p139 = scmp.eq.s32.totalorder %s21, 3
      %p140 = por %p138, %p139
      %p142 = scmp.ne.s32.totalorder %s127, %s141
      %p143 = scmp.eq.s32.totalorder %s21, 0
      %p144 = por %p142, %p143
      %s146 = sadd.s32 %s145, 1
      %p149 = scmp.eq.s32.totalorder %s15, 3
      %p150 = scmp.ne.s32.totalorder %s145, %s147
      %p151 = scmp.eq.s32.totalorder %s15, 0
      %p152 = por %p150, %p151
      %p153 = scmp.ne.s32.totalorder %s145, %s147
      %p154 = scmp.eq.s32.totalorder %s20, 3
      %p155 = por %p153, %p154
      %p156 = scmp.ne.s32.totalorder %s147, %s148
      %p157 = scmp.eq.s32.totalorder %s20, 0
      %p158 = por %p156, %p157
      %p159 = scmp.ne.s32.totalorder %s147, %s148
      %p160 = scmp.eq.s32.totalorder %s21, 3
      %p161 = por %p159, %p160
      %p163 = scmp.ne.s32.totalorder %s148, %s162
      %p164 = scmp.eq.s32.totalorder %s21, 0
      %p165 = por %p163, %p164
      %s166 = ssub.s32 %s22, %s34
      %s167 = ssub.s32 %s23, %s30
      %s168 = sor.u32 %s166, %s167
      %p169 = scmp.eq.s32.totalorder %s168, 0
      %s171 = sadd.s32 %s170, 1
      %s172 = scalar_select %p169, %s170, %s171
      %p175 = pneg %p169
      %p176 = scmp.eq.s32.totalorder %s15, 3
      %p177 = por %p175, %p176
      %p178 = scmp.ne.s32.totalorder %s170, %s173
      %p179 = scmp.eq.s32.totalorder %s15, 0
      %p180 = por %p178, %p179
      %p181 = scmp.ne.s32.totalorder %s170, %s173
      %p182 = scmp.eq.s32.totalorder %s20, 3
      %p183 = por %p181, %p182
      %p184 = scmp.ne.s32.totalorder %s173, %s174
      %p185 = scmp.eq.s32.totalorder %s20, 0
      %p186 = por %p184, %p185
      %p187 = scmp.ne.s32.totalorder %s173, %s174
      %p188 = scmp.eq.s32.totalorder %s21, 3
      %p189 = por %p187, %p188
      %p191 = scmp.ne.s32.totalorder %s174, %s190
      %p192 = scmp.eq.s32.totalorder %s21, 0
      %p193 = por %p191, %p192
      %p194 = scmp.le.s32.totalorder 1, %s15
      %p195 = scmp.lt.s32.totalorder %s15, 5
      %p196 = pnand %p194, %p195
      %p197 = pneg %p196
      // Predicated region
      $region9: #{_lambda_.1} parent=5 // pred_check
        _
      $region10: #{_lambda_.1} parent=5 // pred_check_branch
        %199 = sbr.rel (%p196) target = $region12
      $region11: #{_lambda_.1} parent=5 // pred_region
        %s200 = ssub.s32 %s15, 1
        // Predicated region
        $region13: #{_lambda_.1} parent=11 // pred_check
          %p201 = pneg %p74
        $region14: #{_lambda_.1} parent=11 // pred_check_branch
          %203 = sbr.rel (%p201) target = $region16
        $region15: #{_lambda_.1} parent=11 // pred_region
          _
        $region16: #{_lambda_.1} parent=11 // pred_fallthru
          _
        // Predicated region
        $region17: #{_lambda_.1} parent=11 // pred_check
          %p204 = pneg %p95
        $region18: #{_lambda_.1} parent=11 // pred_check_branch
          %206 = sbr.rel (%p204) target = $region20
        $region19: #{_lambda_.1} parent=11 // pred_region
          _
        $region20: #{_lambda_.1} parent=11 // pred_fallthru
          _
        // Predicated region
        $region21: #{_lambda_.1} parent=11 // pred_check
          %p207 = pneg %p116
        $region22: #{_lambda_.1} parent=11 // pred_check_branch
          %209 = sbr.rel (%p207) target = $region24
        $region23: #{_lambda_.1} parent=11 // pred_region
          _
        $region24: #{_lambda_.1} parent=11 // pred_fallthru
          _
        // Predicated region
        $region25: #{_lambda_.1} parent=11 // pred_check
          %p210 = pneg %p137
        $region26: #{_lambda_.1} parent=11 // pred_check_branch
          %212 = sbr.rel (%p210) target = $region28
        $region27: #{_lambda_.1} parent=11 // pred_region
          _
        $region28: #{_lambda_.1} parent=11 // pred_fallthru
          _
        // Predicated region
        $region29: #{_lambda_.1} parent=11 // pred_check
          %p213 = pneg %p158
        $region30: #{_lambda_.1} parent=11 // pred_check_branch
          %215 = sbr.rel (%p213) target = $region32
        $region31: #{_lambda_.1} parent=11 // pred_region
          _
        $region32: #{_lambda_.1} parent=11 // pred_fallthru
          _
      $region12: #{_lambda_.1} parent=5 // pred_fallthru
        _
      %p216 = scmp.lt.s32.totalorder %s15, 4
      // Predicated region
      $region33: #{_lambda_.1} parent=5 // pred_check
        %p217 = pneg %p216
      $region34: #{_lambda_.1} parent=5 // pred_check_branch
        %219 = sbr.rel (%p217) target = $region36
      $region35: #{_lambda_.1} parent=5 // pred_region
        // Predicated region
        $region37: #{_lambda_.1} parent=35 // pred_check
          %p220 = pneg %p47
        $region38: #{_lambda_.1} parent=35 // pred_check_branch
          %222 = sbr.rel (%p220) target = $region40
        $region39: #{_lambda_.1} parent=35 // pred_region
          %p223 = scmp.lt.s32.totalorder %s22, 1
          %s224 = scalar_select %p223, %s22, 1
          %s225 = smul.addr %s224, 8
          %s226 = smul.addr %s225, 8
          %s227 = scalar_lea.vmem %s0, %s226
        $region40: #{_lambda_.1} parent=35 // pred_fallthru
          _
      $region36: #{_lambda_.1} parent=5 // pred_fallthru
        _
      %p228 = scmp.le.s32.totalorder 1, %s15
      %p229 = scmp.lt.s32.totalorder %s15, 5
      %p230 = pnand %p228, %p229
      %p231 = pneg %p230
      // Predicated region
      $region41: #{_lambda_.1} parent=5 // pred_check
        _
      $region42: #{_lambda_.1} parent=5 // pred_check_branch
        %233 = sbr.rel (%p230) target = $region44
      $region43: #{_lambda_.1} parent=5 // pred_region
        %s234 = ssub.s32 %s15, 1
        %p235 = scmp.lt.s32.totalorder %s24, 1
        %s236 = scalar_select %p235, %s24, 1
        %s237 = smul.addr %s236, 8
        %s238 = smul.addr %s237, 8
        %s239 = scalar_lea.vmem %s0, %s238
        %p240 = pneg %p53
        %p241 = pneg %p50
        %p242 = pneg %p74
        %p243 = pneg %p71
        %p244 = pneg %p95
        %p245 = pneg %p92
        %p246 = pneg %p116
        %p247 = pneg %p113
        %p248 = pneg %p137
        %p249 = pneg %p134
        %p250 = pneg %p158
        %p251 = pneg %p155
        %p252 = pneg %p186
        %p253 = pneg %p183
        %s254 = sand.u32 %s173, 1
        %s255 = scalar_lea.sflag [#allocation4], %s254
        %s256 = sand.u32 %s173, 1
        %s257 = smul.addr %s256, 32
        %s258 = scalar_lea.vmem [#allocation3], %s257
        %p259 = scmp.lt.s32.totalorder %s24, 1
        %s260 = scalar_select %p259, %s24, 1
        %s261 = smul.addr %s260, 8
        %s262 = smul.addr %s261, 8
        %s263 = scalar_lea.vmem %s0, %s262
        %s264 = smul.u32 4, %s25
        %p266 = scmp.eq.s32.totalorder %s25, 0
        // Predicated region
        $region45: #{_lambda_.1} parent=43 // pred_check
          %p267 = pneg %p266
        $region46: #{_lambda_.1} parent=43 // pred_check_branch
          %269 = sbr.rel (%p267) target = $region48
        $region47: #{_lambda_.1} parent=43 // pred_region
          loop: start=0, step=1, limit=2
          $region49: #{_lambda_.1} parent=47 // loop_pre_header
            _
          $region50: #{_lambda_.1} parent=47 // loop_header
            %s271 = sphi 0, %s275
            %p272 = scmp.ge.s32.totalorder %s271, 2
            %v276 = vphi 0.0, %v293
            %v277 = vphi 0.0, %v307
          $region51: #{_lambda_.1} parent=47 // loop_header_branch
            %274 = sbr.rel (%p272) target = $region55
          $region52: #{_lambda_.1} parent=47 // loop_body
            %s278 = smul.u32 %s271, 32
            %s279 = scalar_lea.vmem %s263, %s278
            %v280 = vld [vmem:[%s279] sm:$0xff]
            %v281 = vld [vmem:[%s279 + $0x8] sm:$0xff]
            %v282 = vld [vmem:[%s279 + $0x10] sm:$0xff]
            %v283 = vld [vmem:[%s279 + $0x18] sm:$0xff]
            %v284 = vadd.f32 %v280, %v281
            %v285 = vadd.f32 %v284, %v282
            %v286 = vadd.f32 %v285, %v283
            %v287 = vrot.slane %v286, 4
            %v288 = vadd.f32 %v286, %v287
            %v289 = vrot.slane %v288, 2
            %v290 = vadd.f32 %v288, %v289
            %v291 = vrot.slane %v290, 1
            %v292 = vadd.f32 %v290, %v291
            %v293 = vadd.f32 %v276, %v292
            %v294 = vmul.f32 %v280, %v280
            %v295 = vmul.f32 %v281, %v281
            %v296 = vmul.f32 %v282, %v282
            %v297 = vmul.f32 %v283, %v283
            %v298 = vadd.f32 %v294, %v295
            %v299 = vadd.f32 %v298, %v296
            %v300 = vadd.f32 %v299, %v297
            %v301 = vrot.slane %v300, 4
            %v302 = vadd.f32 %v300, %v301
            %v303 = vrot.slane %v302, 2
            %v304 = vadd.f32 %v302, %v303
            %v305 = vrot.slane %v304, 1
            %v306 = vadd.f32 %v304, %v305
            %v307 = vadd.f32 %v277, %v306
          $region53: #{_lambda_.1} parent=47 // loop_footer
            %s275 = sadd.s32 1, %s271
          $region54: #{_lambda_.1} parent=47 // loop_footer_branch
            %270 = sbr.rel target = $region50
          $region55: #{_lambda_.1} parent=47 // loop_exit
            _
          %v308 = vld [vmem:[%s5] sm:$0xff]
          %v309 = vld [vmem:[%s5 + $0x8] sm:$0xff]
          %v310 = vld [vmem:[%s5 + $0x10] sm:$0xff]
          %v311 = vld [vmem:[%s5 + $0x18] sm:$0xff]
          %v312 = vld [vmem:[%s5 + $0x20] sm:$0xff]
          %v313 = vld [vmem:[%s5 + $0x28] sm:$0xff]
          %v314 = vld [vmem:[%s5 + $0x30] sm:$0xff]
          %v315 = vld [vmem:[%s5 + $0x38] sm:$0xff]
          %v316 = vld [vmem:[%s5 + $0x40] sm:$0xff]
          %v317 = vld [vmem:[%s5 + $0x48] sm:$0xff]
          %v318 = vld [vmem:[%s5 + $0x50] sm:$0xff]
          %v319 = vld [vmem:[%s5 + $0x58] sm:$0xff]
          %v320 = vld [vmem:[%s5 + $0x60] sm:$0xff]
          %v321 = vld [vmem:[%s5 + $0x68] sm:$0xff]
          %v322 = vld [vmem:[%s5 + $0x70] sm:$0xff]
          %v323 = vld [vmem:[%s5 + $0x78] sm:$0xff]
          %324 = vmatprep.subr.mxu0 0.0
          %325 = vmatpush1.msra.mxu0 %v308
          %326 = vmatprep.subr.mxu0 0.0
          %327 = vmatpush1.msra.mxu0 %v309
          %328 = vmatprep.subr.mxu0 0.0
          %329 = vmatpush1.msra.mxu0 %v310
          %330 = vmatprep.subr.mxu0 0.0
          %331 = vmatpush1.msra.mxu0 %v311
          %332 = vmatprep.subr.mxu0 0.0
          %333 = vmatpush1.msra.mxu0 %v312
          %334 = vmatprep.subr.mxu0 0.0
          %335 = vmatpush1.msra.mxu0 %v313
          %336 = vmatprep.subr.mxu0 0.0
          %337 = vmatpush1.msra.mxu0 %v314
          %338 = vmatprep.subr.mxu0 0.0
          %339 = vmatpush1.msra.mxu0 %v315
          %340 = vmatprep.subr.mxu0 0.0
          %341 = vmatpush1.msra.mxu0 %v316
          %342 = vmatprep.subr.mxu0 0.0
          %343 = vmatpush1.msra.mxu0 %v317
          %344 = vmatprep.subr.mxu0 0.0
          %345 = vmatpush1.msra.mxu0 %v318
          %346 = vmatprep.subr.mxu0 0.0
          %347 = vmatpush1.msra.mxu0 %v319
          %348 = vmatprep.subr.mxu0 0.0
          %349 = vmatpush1.msra.mxu0 %v320
          %350 = vmatprep.subr.mxu0 0.0
          %351 = vmatpush1.msra.mxu0 %v321
          %352 = vmatprep.subr.mxu0 0.0
          %353 = vmatpush1.msra.mxu0 %v322
          %354 = vmatprep.subr.mxu0 0.0
          %355 = vmatpush1.msra.mxu0 %v323
          %356 = vmatprep.subr.mxu0 0.0
          %357 = vmatpush1.msra.mxu0 0.0
          %358 = vmatprep.subr.mxu0 0.0
          %359 = vmatpush1.msra.mxu0 0.0
          %360 = vmatprep.subr.mxu0 0.0
          %361 = vmatpush1.msra.mxu0 0.0
          %362 = vmatprep.subr.mxu0 0.0
          %363 = vmatpush1.msra.mxu0 0.0
          %364 = vmatprep.subr.mxu0 0.0
          %365 = vmatpush1.msra.mxu0 0.0
          %366 = vmatprep.subr.mxu0 0.0
          %367 = vmatpush1.msra.mxu0 0.0
          %368 = vmatprep.subr.mxu0 0.0
          %369 = vmatpush1.msra.mxu0 0.0
          %370 = vmatprep.subr.mxu0 0.0
          %371 = vmatpush1.msra.mxu0 0.0
          %372 = vmatprep.subr.mxu0 0.0
          %373 = vmatpush1.msra.mxu0 0.0
          %374 = vmatprep.subr.mxu0 0.0
          %375 = vmatpush1.msra.mxu0 0.0
          %376 = vmatprep.subr.mxu0 0.0
          %377 = vmatpush1.msra.mxu0 0.0
          %378 = vmatprep.subr.mxu0 0.0
          %379 = vmatpush1.msra.mxu0 0.0
          %380 = vmatprep.subr.mxu0 0.0
          %381 = vmatpush1.msra.mxu0 0.0
          %382 = vmatprep.subr.mxu0 0.0
          %383 = vmatpush1.msra.mxu0 0.0
          %384 = vmatprep.subr.mxu0 0.0
          %385 = vmatpush1.msra.mxu0 0.0
          %386 = vmatprep.subr.mxu0 0.0
          %387 = vmatpush1.msra.mxu0 0.0
          %388 = vmatprep.mubr.f32.mxu0 0.0
          %389 = vmatmul.mubr.f32.gmra.mrb[0].mxu0 %v276
          %v390 = vpop.f32.mrb[0].mxu0
          %v391 = vadd.f32 0.0, %v390
          %v392 = vpop.f32.mrb[0].mxu0
          %393 = vdwg.mxu0
          %394 = vmatprep.subr.mxu0 0.0
          %395 = vmatpush1.msra.mxu0 %v308
          %396 = vmatprep.subr.mxu0 0.0
          %397 = vmatpush1.msra.mxu0 %v309
          %398 = vmatprep.subr.mxu0 0.0
          %399 = vmatpush1.msra.mxu0 %v310
          %400 = vmatprep.subr.mxu0 0.0
          %401 = vmatpush1.msra.mxu0 %v311
          %402 = vmatprep.subr.mxu0 0.0
          %403 = vmatpush1.msra.mxu0 %v312
          %404 = vmatprep.subr.mxu0 0.0
          %405 = vmatpush1.msra.mxu0 %v313
          %406 = vmatprep.subr.mxu0 0.0
          %407 = vmatpush1.msra.mxu0 %v314
          %408 = vmatprep.subr.mxu0 0.0
          %409 = vmatpush1.msra.mxu0 %v315
          %410 = vmatprep.subr.mxu0 0.0
          %411 = vmatpush1.msra.mxu0 %v316
          %412 = vmatprep.subr.mxu0 0.0
          %413 = vmatpush1.msra.mxu0 %v317
          %414 = vmatprep.subr.mxu0 0.0
          %415 = vmatpush1.msra.mxu0 %v318
          %416 = vmatprep.subr.mxu0 0.0
          %417 = vmatpush1.msra.mxu0 %v319
          %418 = vmatprep.subr.mxu0 0.0
          %419 = vmatpush1.msra.mxu0 %v320
          %420 = vmatprep.subr.mxu0 0.0
          %421 = vmatpush1.msra.mxu0 %v321
          %422 = vmatprep.subr.mxu0 0.0
          %423 = vmatpush1.msra.mxu0 %v322
          %424 = vmatprep.subr.mxu0 0.0
          %425 = vmatpush1.msra.mxu0 %v323
          %426 = vmatprep.subr.mxu0 0.0
          %427 = vmatpush1.msra.mxu0 0.0
          %428 = vmatprep.subr.mxu0 0.0
          %429 = vmatpush1.msra.mxu0 0.0
          %430 = vmatprep.subr.mxu0 0.0
          %431 = vmatpush1.msra.mxu0 0.0
          %432 = vmatprep.subr.mxu0 0.0
          %433 = vmatpush1.msra.mxu0 0.0
          %434 = vmatprep.subr.mxu0 0.0
          %435 = vmatpush1.msra.mxu0 0.0
          %436 = vmatprep.subr.mxu0 0.0
          %437 = vmatpush1.msra.mxu0 0.0
          %438 = vmatprep.subr.mxu0 0.0
          %439 = vmatpush1.msra.mxu0 0.0
          %440 = vmatprep.subr.mxu0 0.0
          %441 = vmatpush1.msra.mxu0 0.0
          %442 = vmatprep.subr.mxu0 0.0
          %443 = vmatpush1.msra.mxu0 0.0
          %444 = vmatprep.subr.mxu0 0.0
          %445 = vmatpush1.msra.mxu0 0.0
          %446 = vmatprep.subr.mxu0 0.0
          %447 = vmatpush1.msra.mxu0 0.0
          %448 = vmatprep.subr.mxu0 0.0
          %449 = vmatpush1.msra.mxu0 0.0
          %450 = vmatprep.subr.mxu0 0.0
          %451 = vmatpush1.msra.mxu0 0.0
          %452 = vmatprep.subr.mxu0 0.0
          %453 = vmatpush1.msra.mxu0 0.0
          %454 = vmatprep.subr.mxu0 0.0
          %455 = vmatpush1.msra.mxu0 0.0
          %456 = vmatprep.subr.mxu0 0.0
          %457 = vmatpush1.msra.mxu0 0.0
          %458 = vmatprep.mubr.f32.mxu0 0.0
          %459 = vmatmul.mubr.f32.gmra.mrb[0].mxu0 %v277
          %v460 = vpop.f32.mrb[0].mxu0
          %v461 = vadd.f32 0.0, %v460
          %v462 = vpop.f32.mrb[0].mxu0
          %463 = vdwg.mxu0
          %v464 = vmul.f32 %v391, %v391
          %v465 = vsub.f32 %v461, %v464
          %v466 = vmax.f32 %v465, 0.0
          %v467 = vadd.f32 %v466, 1e-05
          %v468 = vrsqrt.pop %v467
          loop: start=0, step=1, limit=2
          $region56: #{_lambda_.1} parent=47 // loop_pre_header
            _
          $region57: #{_lambda_.1} parent=47 // loop_header
            %s470 = sphi 0, %s474
            %p471 = scmp.ge.s32.totalorder %s470, 2
          $region58: #{_lambda_.1} parent=47 // loop_header_branch
            %473 = sbr.rel (%p471) target = $region62
          $region59: #{_lambda_.1} parent=47 // loop_body
            %s475 = smul.u32 %s470, 32
            %s476 = scalar_lea.vmem %s263, %s475
            %v477 = vld [vmem:[%s476] sm:$0xff]
            %v478 = vld [vmem:[%s476 + $0x8] sm:$0xff]
            %v479 = vld [vmem:[%s476 + $0x10] sm:$0xff]
            %v480 = vld [vmem:[%s476 + $0x18] sm:$0xff]
            %v481 = vlaneseq
            %v482 = vshrl.u32 %v481, 7
            %v483 = vsub.s32 0, %v482
            %v484 = vrot.slane %v391, %v483
            %v485 = vsub.f32 %v477, %v484
            %v486 = vsub.f32 %v478, %v484
            %v487 = vsub.f32 %v479, %v484
            %v488 = vsub.f32 %v480, %v484
            %v489 = vlaneseq
            %v490 = vshrl.u32 %v489, 7
            %v491 = vsub.s32 0, %v490
            %v492 = vrot.slane %v468, %v491
            %v493 = vmul.f32 %v485, %v492
            %v494 = vmul.f32 %v486, %v492
            %v495 = vmul.f32 %v487, %v492
            %v496 = vmul.f32 %v488, %v492
            %v497 = vpack.c.bf16 %v494, %v493
            %v498 = vpack.c.bf16 %v496, %v495
            %v499 = vld [vmem:[%s1] sm:$0xff]
            %v500 = vld [vmem:[%s1 + $0x8] sm:$0xf]
            %v501 = vld [vmem:[%s1 + $0xc] sm:$0xff]
            %v502 = vld [vmem:[%s1 + $0x14] sm:$0xf]
            %v503 = vld [vmem:[%s1 + $0x18] sm:$0xff]
            %v504 = vld [vmem:[%s1 + $0x20] sm:$0xf]
            %v505 = vld [vmem:[%s1 + $0x24] sm:$0xff]
            %v506 = vld [vmem:[%s1 + $0x2c] sm:$0xf]
            %v507 = vld [vmem:[%s1 + $0x30] sm:$0xff]
            %v508 = vld [vmem:[%s1 + $0x38] sm:$0xf]
            %v509 = vld [vmem:[%s1 + $0x3c] sm:$0xff]
            %v510 = vld [vmem:[%s1 + $0x44] sm:$0xf]
            %v511 = vld [vmem:[%s1 + $0x48] sm:$0xff]
            %v512 = vld [vmem:[%s1 + $0x50] sm:$0xf]
            %v513 = vld [vmem:[%s1 + $0x54] sm:$0xff]
            %v514 = vld [vmem:[%s1 + $0x5c] sm:$0xf]
            %v515 = vld [vmem:[%s1 + $0x60] sm:$0xff]
            %v516 = vld [vmem:[%s1 + $0x68] sm:$0xf]
            %v517 = vld [vmem:[%s1 + $0x6c] sm:$0xff]
            %v518 = vld [vmem:[%s1 + $0x74] sm:$0xf]
            %v519 = vld [vmem:[%s1 + $0x78] sm:$0xff]
            %v520 = vld [vmem:[%s1 + $0x80] sm:$0xf]
            %v521 = vld [vmem:[%s1 + $0x84] sm:$0xff]
            %v522 = vld [vmem:[%s1 + $0x8c] sm:$0xf]
            %v523 = vld [vmem:[%s1 + $0x90] sm:$0xff]
            %v524 = vld [vmem:[%s1 + $0x98] sm:$0xf]
            %v525 = vld [vmem:[%s1 + $0x9c] sm:$0xff]
            %v526 = vld [vmem:[%s1 + $0xa4] sm:$0xf]
            %v527 = vld [vmem:[%s1 + $0xa8] sm:$0xff]
            %v528 = vld [vmem:[%s1 + $0xb0] sm:$0xf]
            %v529 = vld [vmem:[%s1 + $0xb4] sm:$0xff]
            %v530 = vld [vmem:[%s1 + $0xbc] sm:$0xf]
            %v531 = vld [vmem:[%s2] sm:$0x7]
            %v533 = vlaneseq
            %v534 = vshrl.u32 %v533, 7
            %v535 = vsub.s32 0, %v534
            %v536 = vrot.slane %v531, %v535
            %v537 = vlaneseq
            %v538 = vshrl.u32 %v537, 7
            %v539 = vsub.s32 1, %v538
            %v540 = vrot.slane %v531, %v539
            %v541 = vlaneseq
            %v542 = vshrl.u32 %v541, 7
            %v543 = vsub.s32 2, %v542
            %v544 = vrot.slane %v531, %v543
            %v580 = vunpack.c.l.b16 %v499
            %v581 = vunpack.c.h.b16 %v499
            %v582 = vunpack.c.l.b16 %v500
            %v583 = vunpack.c.l.b16 %v501
            %v584 = vunpack.c.h.b16 %v501
            %v585 = vunpack.c.l.b16 %v502
            %v586 = vunpack.c.l.b16 %v503
            %v587 = vunpack.c.h.b16 %v503
            %v588 = vunpack.c.l.b16 %v504
            %v589 = vunpack.c.l.b16 %v505
            %v590 = vunpack.c.h.b16 %v505
            %v591 = vunpack.c.l.b16 %v506
            %v592 = vunpack.c.l.b16 %v507
            %v593 = vunpack.c.h.b16 %v507
            %v594 = vunpack.c.l.b16 %v508
            %v595 = vunpack.c.l.b16 %v509
            %v596 = vunpack.c.h.b16 %v509
            %v597 = vunpack.c.l.b16 %v510
            %v598 = vunpack.c.l.b16 %v511
            %v599 = vunpack.c.h.b16 %v511
            %v600 = vunpack.c.l.b16 %v512
            %v601 = vunpack.c.l.b16 %v513
            %v602 = vunpack.c.h.b16 %v513
            %v603 = vunpack.c.l.b16 %v514
            %v604 = vunpack.c.l.b16 %v515
            %v605 = vunpack.c.h.b16 %v515
            %v606 = vunpack.c.l.b16 %v516
            %v607 = vunpack.c.l.b16 %v517
            %v608 = vunpack.c.h.b16 %v517
            %v609 = vunpack.c.l.b16 %v518
            %v610 = vunpack.c.l.b16 %v519
            %v611 = vunpack.c.h.b16 %v519
            %v612 = vunpack.c.l.b16 %v520
            %v613 = vunpack.c.l.b16 %v521
            %v614 = vunpack.c.h.b16 %v521
            %v615 = vunpack.c.l.b16 %v522
            %v616 = vunpack.c.l.b16 %v523
            %v617 = vunpack.c.h.b16 %v523
            %v618 = vunpack.c.l.b16 %v524
            %v619 = vunpack.c.l.b16 %v525
            %v620 = vunpack.c.h.b16 %v525
            %v621 = vunpack.c.l.b16 %v526
            %v622 = vunpack.c.l.b16 %v527
            %v623 = vunpack.c.h.b16 %v527
            %v624 = vunpack.c.l.b16 %v528
            %v625 = vunpack.c.l.b16 %v529
            %v626 = vunpack.c.h.b16 %v529
            %v627 = vunpack.c.l.b16 %v530
            %v628 = vpack.c.b16 %v583, %v580
            %v629 = vpack.c.b16 %v584, %v581
            %v630 = vpack.c.b16 %v585, %v582
            %v631 = vpack.c.b16 %v589, %v586
            %v632 = vpack.c.b16 %v590, %v587
            %v633 = vpack.c.b16 %v591, %v588
            %v634 = vpack.c.b16 %v595, %v592
            %v635 = vpack.c.b16 %v596, %v593
            %v636 = vpack.c.b16 %v597, %v594
            %v637 = vpack.c.b16 %v601, %v598
            %v638 = vpack.c.b16 %v602, %v599
            %v639 = vpack.c.b16 %v603, %v600
            %v640 = vpack.c.b16 %v607, %v604
            %v641 = vpack.c.b16 %v608, %v605
            %v642 = vpack.c.b16 %v609, %v606
            %v643 = vpack.c.b16 %v613, %v610
            %v644 = vpack.c.b16 %v614, %v611
            %v645 = vpack.c.b16 %v615, %v612
            %v646 = vpack.c.b16 %v619, %v616
            %v647 = vpack.c.b16 %v620, %v617
            %v648 = vpack.c.b16 %v621, %v618
            %v649 = vpack.c.b16 %v625, %v622
            %v650 = vpack.c.b16 %v626, %v623
            %v651 = vpack.c.b16 %v627, %v624
            %676 = vmatprep.subr.bf16.mxu0 %v629
            %677 = vmatpush1.bf16.msra.mxu0 %v628
            %678 = vmatprep.subr.bf16.mxu0 %v632
            %679 = vmatpush1.bf16.msra.mxu0 %v631
            %680 = vmatprep.subr.bf16.mxu0 %v635
            %681 = vmatpush1.bf16.msra.mxu0 %v634
            %682 = vmatprep.subr.bf16.mxu0 %v638
            %683 = vmatpush1.bf16.msra.mxu0 %v637
            %684 = vmatprep.subr.bf16.mxu0 %v641
            %685 = vmatpush1.bf16.msra.mxu0 %v640
            %686 = vmatprep.subr.bf16.mxu0 %v644
            %687 = vmatpush1.bf16.msra.mxu0 %v643
            %688 = vmatprep.subr.bf16.mxu0 %v647
            %689 = vmatpush1.bf16.msra.mxu0 %v646
            %690 = vmatprep.subr.bf16.mxu0 %v650
            %691 = vmatpush1.bf16.msra.mxu0 %v649
            %692 = vmatprep.subr.bf16.mxu0 0
            %693 = vmatpush1.bf16.msra.mxu0 0
            %694 = vmatprep.subr.bf16.mxu0 0
            %695 = vmatpush1.bf16.msra.mxu0 0
            %696 = vmatprep.subr.bf16.mxu0 0
            %697 = vmatpush1.bf16.msra.mxu0 0
            %698 = vmatprep.subr.bf16.mxu0 0
            %699 = vmatpush1.bf16.msra.mxu0 0
            %700 = vmatprep.subr.bf16.mxu0 0
            %701 = vmatpush1.bf16.msra.mxu0 0
            %702 = vmatprep.subr.bf16.mxu0 0
            %703 = vmatpush1.bf16.msra.mxu0 0
            %704 = vmatprep.subr.bf16.mxu0 0
            %705 = vmatpush1.bf16.msra.mxu0 0
            %706 = vmatprep.subr.bf16.mxu0 0
            %707 = vmatpush1.bf16.msra.mxu0 0
            %708 = vmatprep.mubr.bf16.mxu0 0
            %709 = vmatmul.mubr.bf16.gmra.mrb[0].mxu0 %v497
            %v710 = vpop.f32.mrb[0].mxu0
            %v711 = vadd.f32 %v536, %v710
            %v712 = vpop.f32.mrb[0].mxu0
            %v713 = vadd.f32 %v540, %v712
            %v714 = vpop.f32.mrb[0].mxu0
            %v715 = vadd.f32 %v536, %v714
            %v716 = vpop.f32.mrb[0].mxu0
            %v717 = vadd.f32 %v540, %v716
            %718 = vmatprep.mubr.bf16.mxu0 0
            %719 = vmatmul.mubr.bf16.gmra.mrb[0].mxu0 %v498
            %v720 = vpop.f32.mrb[0].mxu0
            %v721 = vadd.f32 %v536, %v720
            %v722 = vpop.f32.mrb[0].mxu0
            %v723 = vadd.f32 %v540, %v722
            %v724 = vpop.f32.mrb[0].mxu0
            %v725 = vadd.f32 %v536, %v724
            %v726 = vpop.f32.mrb[0].mxu0
            %v727 = vadd.f32 %v540, %v726
            %728 = vdwg.mxu0
            %729 = vmatprep.subr.bf16.mxu0 0
            %730 = vmatpush1.bf16.msra.mxu0 %v630
            %731 = vmatprep.subr.bf16.mxu0 0
            %732 = vmatpush1.bf16.msra.mxu0 %v633
            %733 = vmatprep.subr.bf16.mxu0 0
            %734 = vmatpush1.bf16.msra.mxu0 %v636
            %735 = vmatprep.subr.bf16.mxu0 0
            %736 = vmatpush1.bf16.msra.mxu0 %v639
            %737 = vmatprep.subr.bf16.mxu0 0
            %738 = vmatpush1.bf16.msra.mxu0 %v642
            %739 = vmatprep.subr.bf16.mxu0 0
            %740 = vmatpush1.bf16.msra.mxu0 %v645
            %741 = vmatprep.subr.bf16.mxu0 0
            %742 = vmatpush1.bf16.msra.mxu0 %v648
            %743 = vmatprep.subr.bf16.mxu0 0
            %744 = vmatpush1.bf16.msra.mxu0 %v651
            %745 = vmatprep.subr.bf16.mxu0 0
            %746 = vmatpush1.bf16.msra.mxu0 0
            %747 = vmatprep.subr.bf16.mxu0 0
            %748 = vmatpush1.bf16.msra.mxu0 0
            %749 = vmatprep.subr.bf16.mxu0 0
            %750 = vmatpush1.bf16.msra.mxu0 0
            %751 = vmatprep.subr.bf16.mxu0 0
            %752 = vmatpush1.bf16.msra.mxu0 0
            %753 = vmatprep.subr.bf16.mxu0 0
            %754 = vmatpush1.bf16.msra.mxu0 0
            %755 = vmatprep.subr.bf16.mxu0 0
            %756 = vmatpush1.bf16.msra.mxu0 0
            %757 = vmatprep.subr.bf16.mxu0 0
            %758 = vmatpush1.bf16.msra.mxu0 0
            %759 = vmatprep.subr.bf16.mxu0 0
            %760 = vmatpush1.bf16.msra.mxu0 0
            %761 = vmatprep.mubr.bf16.mxu0 0
            %762 = vmatmul.mubr.bf16.gmra.mrb[0].mxu0 %v497
            %v763 = vpop.f32.mrb[0].mxu0
            %v764 = vadd.f32 %v544, %v763
            %v765 = vpop.f32.mrb[0].mxu0
            %v766 = vpop.f32.mrb[0].mxu0
            %v767 = vadd.f32 %v544, %v766
            %v768 = vpop.f32.mrb[0].mxu0
            %769 = vmatprep.mubr.bf16.mxu0 0
            %770 = vmatmul.mubr.bf16.gmra.mrb[0].mxu0 %v498
            %v771 = vpop.f32.mrb[0].mxu0
            %v772 = vadd.f32 %v544, %v771
            %v773 = vpop.f32.mrb[0].mxu0
            %v774 = vpop.f32.mrb[0].mxu0
            %v775 = vadd.f32 %v544, %v774
            %v776 = vpop.f32.mrb[0].mxu0
            %777 = vdwg.mxu0
            %v778 = vpack.c.bf16 %v715, %v711
            %v779 = vpack.c.bf16 %v717, %v713
            %v780 = vpack.c.bf16 %v767, %v764
            %v781 = vpack.c.bf16 %v725, %v721
            %v782 = vpack.c.bf16 %v727, %v723
            %v783 = vpack.c.bf16 %v775, %v772
            %s784 = sshra.s32 %s475, 4
            %s785 = sand.u32 %s475, 15
            %s786 = smul.u32 %s784, 3
            %s787 = smul.addr %s786, 8
            %s788 = scalar_lea.vmem [#allocation2], %s787
            %789 = vst [vmem:[%s788] sm:$0xff] %v778
            %790 = vst [vmem:[%s788 + $0x8] sm:$0xff] %v779
            %791 = vst [vmem:[%s788 + $0x10] sm:$0xff] %v780
            %792 = vst [vmem:[%s788 + $0x18] sm:$0xff] %v781
            %793 = vst [vmem:[%s788 + $0x20] sm:$0xff] %v782
            %794 = vst [vmem:[%s788 + $0x28] sm:$0xff] %v783
          $region60: #{_lambda_.1} parent=47 // loop_footer
            %s474 = sadd.s32 1, %s470
          $region61: #{_lambda_.1} parent=47 // loop_footer_branch
            %469 = sbr.rel target = $region57
          $region62: #{_lambda_.1} parent=47 // loop_exit
            _
        $region48: #{_lambda_.1} parent=43 // pred_fallthru
          _
        %s795 = smul.u32 %s25, 32
        %s796 = sshra.s32 %s795, 4
        %s797 = sand.u32 %s795, 15
        %s798 = smul.u32 %s796, 3
        %s799 = smul.addr %s798, 8
        %s800 = scalar_lea.vmem [#allocation2], %s799
        %v801 = vld [vmem:[%s800] sm:$0xff]
        %v802 = vld [vmem:[%s800 + $0x18] sm:$0xff]
        %v803 = vld [vmem:[#allocation2 + $0x8] sm:$0xff]
        %v804 = vld [vmem:[#allocation2 + $0x20] sm:$0xff]
        %v805 = vld [vmem:[#allocation2 + $0x38] sm:$0xff]
        %v806 = vld [vmem:[#allocation2 + $0x50] sm:$0xff]
        %v807 = vld [vmem:[#allocation2 + $0x10] sm:$0xff]
        %v808 = vld [vmem:[#allocation2 + $0x28] sm:$0xff]
        %v809 = vld [vmem:[#allocation2 + $0x40] sm:$0xff]
        %v810 = vld [vmem:[#allocation2 + $0x58] sm:$0xff]
        %811 = vmatprep.subr.bf16.mxu0 0
        %812 = vmatpush1.bf16.xpose.msra.mxu0 %v803
        %813 = vmatprep.subr.bf16.mxu0 0
        %814 = vmatpush1.bf16.xpose.msra.mxu0 %v804
        %815 = vmatprep.subr.bf16.mxu0 0
        %816 = vmatpush1.bf16.xpose.msra.mxu0 %v805
        %817 = vmatprep.subr.bf16.mxu0 0
        %818 = vmatpush1.bf16.xpose.msra.mxu0 %v806
        %819 = vmatprep.subr.bf16.mxu0 0
        %820 = vmatpush1.bf16.xpose.msra.mxu0 0
        %821 = vmatprep.subr.bf16.mxu0 0
        %822 = vmatpush1.bf16.xpose.msra.mxu0 0
        %823 = vmatprep.subr.bf16.mxu0 0
        %824 = vmatpush1.bf16.xpose.msra.mxu0 0
        %825 = vmatprep.subr.bf16.mxu0 0
        %826 = vmatpush1.bf16.xpose.msra.mxu0 0
        %827 = vmatprep.subr.bf16.mxu0 0
        %828 = vmatpush1.bf16.xpose.msra.mxu0 0
        %829 = vmatprep.subr.bf16.mxu0 0
        %830 = vmatpush1.bf16.xpose.msra.mxu0 0
        %831 = vmatprep.subr.bf16.mxu0 0
        %832 = vmatpush1.bf16.xpose.msra.mxu0 0
        %833 = vmatprep.subr.bf16.mxu0 0
        %834 = vmatpush1.bf16.xpose.msra.mxu0 0
        %835 = vmatprep.subr.bf16.mxu0 0
        %836 = vmatpush1.bf16.xpose.msra.mxu0 0
        %837 = vmatprep.subr.bf16.mxu0 0
        %838 = vmatpush1.bf16.xpose.msra.mxu0 0
        %839 = vmatprep.subr.bf16.mxu0 0
        %840 = vmatpush1.bf16.xpose.msra.mxu0 0
        %841 = vmatprep.subr.bf16.mxu0 0
        %842 = vmatpush1.bf16.xpose.msra.mxu0 0
        %843 = vmatprep.mubr.bf16.mxu0 0
        %844 = vmatmul.mubr.bf16.gmra.mrb[0].mxu0 %v801
        %v845 = vpop.f32.mrb[0].mxu0
        %v846 = vadd.f32 0.0, %v845
        %v847 = vpop.f32.mrb[0].mxu0
        %v848 = vpop.f32.mrb[0].mxu0
        %v849 = vadd.f32 0.0, %v848
        %v850 = vpop.f32.mrb[0].mxu0
        %851 = vmatprep.mubr.bf16.mxu0 0
        %852 = vmatmul.mubr.bf16.gmra.mrb[0].mxu0 %v802
        %v853 = vpop.f32.mrb[0].mxu0
        %v854 = vadd.f32 0.0, %v853
        %v855 = vpop.f32.mrb[0].mxu0
        %v856 = vpop.f32.mrb[0].mxu0
        %v857 = vadd.f32 0.0, %v856
        %v858 = vpop.f32.mrb[0].mxu0
        %859 = vdwg.mxu0
        %vm860 = vcmask 523264
        %v861 = vsel %vm860, %v846, -inf
        %862 = vmax.xlane.f32.xlu0 %v861
        %v863 = vpop.xlane.xlu0 %862
        %v864 = vsel %vm860, %v849, -inf
        %865 = vmax.xlane.f32.xlu0 %v864
        %v866 = vpop.xlane.xlu0 %865
        %v867 = vsel %vm860, %v854, -inf
        %868 = vmax.xlane.f32.xlu0 %v867
        %v869 = vpop.xlane.xlu0 %868
        %v870 = vsel %vm860, %v857, -inf
        %871 = vmax.xlane.f32.xlu0 %v870
        %v872 = vpop.xlane.xlu0 %871
        %v873 = vsub.f32 %v846, %v863
        %v874 = vsub.f32 %v849, %v866
        %v875 = vsub.f32 %v854, %v869
        %v876 = vsub.f32 %v857, %v872
        %v877 = vmul.f32 %v873, 1.442695
        %v878 = vpow.pop %v877
        %v879 = vmul.f32 %v874, 1.442695
        %v880 = vpow.pop %v879
        %v881 = vmul.f32 %v875, 1.442695
        %v882 = vpow.pop %v881
        %v883 = vmul.f32 %v876, 1.442695
        %v884 = vpow.pop %v883
        %v885 = vsel %vm860, %v878, 0.0
        %886 = vadd.xlane.f32.xlu0 %v885
        %v887 = vpop.xlane.xlu0 %886
        %v888 = vsel %vm860, %v880, 0.0
        %889 = vadd.xlane.f32.xlu0 %v888
        %v890 = vpop.xlane.xlu0 %889
        %v891 = vsel %vm860, %v882, 0.0
        %892 = vadd.xlane.f32.xlu0 %v891
        %v893 = vpop.xlane.xlu0 %892
        %v894 = vsel %vm860, %v884, 0.0
        %895 = vadd.xlane.f32.xlu0 %v894
        %v896 = vpop.xlane.xlu0 %895
        %v897 = vpack.c.bf16 %v880, %v878
        %v898 = vpack.c.bf16 %v884, %v882
        %v900 = vsel %vm860, %v897, 0
        %v903 = vsel %vm860, %v898, 0
        %905 = vmatprep.subr.bf16.mxu0 0
        %906 = vmatpush1.bf16.msra.mxu0 %v807
        %907 = vmatprep.subr.bf16.mxu0 0
        %908 = vmatpush1.bf16.msra.mxu0 %v808
        %909 = vmatprep.subr.bf16.mxu0 0
        %910 = vmatpush1.bf16.msra.mxu0 %v809
        %911 = vmatprep.subr.bf16.mxu0 0
        %912 = vmatpush1.bf16.msra.mxu0 %v810
        %913 = vmatprep.subr.bf16.mxu0 0
        %914 = vmatpush1.bf16.msra.mxu0 0
        %915 = vmatprep.subr.bf16.mxu0 0
        %916 = vmatpush1.bf16.msra.mxu0 0
        %917 = vmatprep.subr.bf16.mxu0 0
        %918 = vmatpush1.bf16.msra.mxu0 0
        %919 = vmatprep.subr.bf16.mxu0 0
        %920 = vmatpush1.bf16.msra.mxu0 0
        %921 = vmatprep.subr.bf16.mxu0 0
        %922 = vmatpush1.bf16.msra.mxu0 0
        %923 = vmatprep.subr.bf16.mxu0 0
        %924 = vmatpush1.bf16.msra.mxu0 0
        %925 = vmatprep.subr.bf16.mxu0 0
        %926 = vmatpush1.bf16.msra.mxu0 0
        %927 = vmatprep.subr.bf16.mxu0 0
        %928 = vmatpush1.bf16.msra.mxu0 0
        %929 = vmatprep.subr.bf16.mxu0 0
        %930 = vmatpush1.bf16.msra.mxu0 0
        %931 = vmatprep.subr.bf16.mxu0 0
        %932 = vmatpush1.bf16.msra.mxu0 0
        %933 = vmatprep.subr.bf16.mxu0 0
        %934 = vmatpush1.bf16.msra.mxu0 0
        %935 = vmatprep.subr.bf16.mxu0 0
        %936 = vmatpush1.bf16.msra.mxu0 0
        %937 = vmatprep.mubr.bf16.mxu0 0
        %938 = vmatmul.mubr.bf16.gmra.mrb[0].mxu0 %v900
        %v939 = vpop.f32.mrb[0].mxu0
        %v940 = vadd.f32 0.0, %v939
        %v941 = vpop.f32.mrb[0].mxu0
        %v942 = vpop.f32.mrb[0].mxu0
        %v943 = vadd.f32 0.0, %v942
        %v944 = vpop.f32.mrb[0].mxu0
        %945 = vmatprep.mubr.bf16.mxu0 0
        %946 = vmatmul.mubr.bf16.gmra.mrb[0].mxu0 %v903
        %v947 = vpop.f32.mrb[0].mxu0
        %v948 = vadd.f32 0.0, %v947
        %v949 = vpop.f32.mrb[0].mxu0
        %v950 = vpop.f32.mrb[0].mxu0
        %v951 = vadd.f32 0.0, %v950
        %v952 = vpop.f32.mrb[0].mxu0
        %953 = vdwg.mxu0
        %v954 = vrcp.pop %v887
        %v955 = vrcp.pop %v890
        %v956 = vrcp.pop %v893
        %v957 = vrcp.pop %v896
        %v958 = vmul.f32 %v940, %v954
        %v959 = vmul.f32 %v943, %v955
        %v960 = vmul.f32 %v948, %v956
        %v961 = vmul.f32 %v951, %v957
        %v962 = vpack.c.bf16 %v959, %v958
        %v963 = vpack.c.bf16 %v961, %v960
        %v964 = vld [vmem:[%s3] sm:$0xf]
        %v965 = vld [vmem:[%s3 + $0x4] sm:$0xf]
        %v966 = vld [vmem:[%s3 + $0x8] sm:$0xf]
        %v967 = vld [vmem:[%s3 + $0xc] sm:$0xf]
        %v968 = vld [vmem:[%s3 + $0x10] sm:$0xf]
        %v969 = vld [vmem:[%s3 + $0x14] sm:$0xf]
        %v970 = vld [vmem:[%s3 + $0x18] sm:$0xf]
        %v971 = vld [vmem:[%s3 + $0x1c] sm:$0xf]
        %v972 = vld [vmem:[%s3 + $0x20] sm:$0xf]
        %v973 = vld [vmem:[%s3 + $0x24] sm:$0xf]
        %v974 = vld [vmem:[%s3 + $0x28] sm:$0xf]
        %v975 = vld [vmem:[%s3 + $0x2c] sm:$0xf]
        %v976 = vld [vmem:[%s3 + $0x30] sm:$0xf]
        %v977 = vld [vmem:[%s3 + $0x34] sm:$0xf]
        %v978 = vld [vmem:[%s3 + $0x38] sm:$0xf]
        %v979 = vld [vmem:[%s3 + $0x3c] sm:$0xf]
        %v980 = vld [vmem:[%s4] sm:$0x1]
        %v982 = vlaneseq
        %v983 = vshrl.u32 %v982, 7
        %v984 = vsub.s32 0, %v983
        %v985 = vrot.slane %v980, %v984
        %v1003 = vunpack.c.l.b16 %v964
        %v1004 = vunpack.c.l.b16 %v965
        %v1005 = vunpack.c.l.b16 %v966
        %v1006 = vunpack.c.l.b16 %v967
        %v1007 = vunpack.c.l.b16 %v968
        %v1008 = vunpack.c.l.b16 %v969
        %v1009 = vunpack.c.l.b16 %v970
        %v1010 = vunpack.c.l.b16 %v971
        %v1011 = vunpack.c.l.b16 %v972
        %v1012 = vunpack.c.l.b16 %v973
        %v1013 = vunpack.c.l.b16 %v974
        %v1014 = vunpack.c.l.b16 %v975
        %v1015 = vunpack.c.l.b16 %v976
        %v1016 = vunpack.c.l.b16 %v977
        %v1017 = vunpack.c.l.b16 %v978
        %v1018 = vunpack.c.l.b16 %v979
        %v1019 = vpack.c.b16 %v1004, %v1003
        %v1020 = vpack.c.b16 %v1006, %v1005
        %v1021 = vpack.c.b16 %v1008, %v1007
        %v1022 = vpack.c.b16 %v1010, %v1009
        %v1023 = vpack.c.b16 %v1012, %v1011
        %v1024 = vpack.c.b16 %v1014, %v1013
        %v1025 = vpack.c.b16 %v1016, %v1015
        %v1026 = vpack.c.b16 %v1018, %v1017
        %1035 = vmatprep.subr.bf16.mxu0 0
        %1036 = vmatpush1.bf16.msra.mxu0 %v1019
        %1037 = vmatprep.subr.bf16.mxu0 0
        %1038 = vmatpush1.bf16.msra.mxu0 %v1020
        %1039 = vmatprep.subr.bf16.mxu0 0
        %1040 = vmatpush1.bf16.msra.mxu0 %v1021
        %1041 = vmatprep.subr.bf16.mxu0 0
        %1042 = vmatpush1.bf16.msra.mxu0 %v1022
        %1043 = vmatprep.subr.bf16.mxu0 0
        %1044 = vmatpush1.bf16.msra.mxu0 %v1023
        %1045 = vmatprep.subr.bf16.mxu0 0
        %1046 = vmatpush1.bf16.msra.mxu0 %v1024
        %1047 = vmatprep.subr.bf16.mxu0 0
        %1048 = vmatpush1.bf16.msra.mxu0 %v1025
        %1049 = vmatprep.subr.bf16.mxu0 0
        %1050 = vmatpush1.bf16.msra.mxu0 %v1026
        %1051 = vmatprep.subr.bf16.mxu0 0
        %1052 = vmatpush1.bf16.msra.mxu0 0
        %1053 = vmatprep.subr.bf16.mxu0 0
        %1054 = vmatpush1.bf16.msra.mxu0 0
        %1055 = vmatprep.subr.bf16.mxu0 0
        %1056 = vmatpush1.bf16.msra.mxu0 0
        %1057 = vmatprep.subr.bf16.mxu0 0
        %1058 = vmatpush1.bf16.msra.mxu0 0
        %1059 = vmatprep.subr.bf16.mxu0 0
        %1060 = vmatpush1.bf16.msra.mxu0 0
        %1061 = vmatprep.subr.bf16.mxu0 0
        %1062 = vmatpush1.bf16.msra.mxu0 0
        %1063 = vmatprep.subr.bf16.mxu0 0
        %1064 = vmatpush1.bf16.msra.mxu0 0
        %1065 = vmatprep.subr.bf16.mxu0 0
        %1066 = vmatpush1.bf16.msra.mxu0 0
        %1067 = vmatprep.mubr.bf16.mxu0 0
        %1068 = vmatmul.mubr.bf16.gmra.mrb[0].mxu0 %v962
        %v1069 = vpop.f32.mrb[0].mxu0
        %v1070 = vadd.f32 %v985, %v1069
        %v1071 = vpop.f32.mrb[0].mxu0
        %v1072 = vpop.f32.mrb[0].mxu0
        %v1073 = vadd.f32 %v985, %v1072
        %v1074 = vpop.f32.mrb[0].mxu0
        %1075 = vmatprep.mubr.bf16.mxu0 0
        %1076 = vmatmul.mubr.bf16.gmra.mrb[0].mxu0 %v963
        %v1077 = vpop.f32.mrb[0].mxu0
        %v1078 = vadd.f32 %v985, %v1077
        %v1079 = vpop.f32.mrb[0].mxu0
        %v1080 = vpop.f32.mrb[0].mxu0
        %v1081 = vadd.f32 %v985, %v1080
        %v1082 = vpop.f32.mrb[0].mxu0
        %1083 = vdwg.mxu0
        %s1084 = scalar_lea.vmem %s263, %s795
        %v1085 = vld [vmem:[%s1084] sm:$0xff]
        %v1086 = vld [vmem:[%s1084 + $0x8] sm:$0xff]
        %v1087 = vld [vmem:[%s1084 + $0x10] sm:$0xff]
        %v1088 = vld [vmem:[%s1084 + $0x18] sm:$0xff]
        %v1089 = vadd.f32 %v1085, %v1070
        %v1090 = vadd.f32 %v1086, %v1073
        %v1091 = vadd.f32 %v1087, %v1078
        %v1092 = vadd.f32 %v1088, %v1081
        %1093 = vst [vmem:[%s258] sm:$0xff] %v1089
        %1094 = vst [vmem:[%s258 + $0x8] sm:$0xff] %v1090
        %1095 = vst [vmem:[%s258 + $0x10] sm:$0xff] %v1091
        %1096 = vst [vmem:[%s258 + $0x18] sm:$0xff] %v1092
        %s1097 = sand.u32 %s173, 1
        %s1098 = scalar_lea.sflag [#allocation4], %s1097
        %s1099 = sand.u32 %s173, 1
        %s1100 = smul.addr %s1099, 32
        %s1101 = scalar_lea.vmem [#allocation3], %s1100
        // Predicated region
        $region63: #{_lambda_.1} parent=43 // pred_check
          %p1102 = pneg %p183
        $region64: #{_lambda_.1} parent=43 // pred_check_branch
          %1104 = sbr.rel (%p1102) target = $region66
        $region65: #{_lambda_.1} parent=43 // pred_region
          %s1105 = smul.u32 4, %s25
          %s1107 = ssub.s32 512, 512
          %1108 = vsyncadd %s1098, %s1107
          %s1109 = smul.addr %s24, 8
          %s1110 = sadd.s32 %s1105, %s1109
          %s1111 = smul.addr %s1110, 128
          %s1112 = scalar_lea.hbm %s6, %s1111
          %s1113 = sshll.u32 %s1101, 4
          %s1114 = int_to_ptr.vmem [resolvable:$true] %s1113
          %1119 = dma.vmem_to_hbm [thread:$0]  %s1114, 512, %s1112, %s1098, 128, 128, 8
        $region66: #{_lambda_.1} parent=43 // pred_fallthru
          _
      $region44: #{_lambda_.1} parent=5 // pred_fallthru
        _
      %p1120 = scmp.le.s32.totalorder 2, %s15
      // Predicated region
      $region67: #{_lambda_.1} parent=5 // pred_check
        %p1121 = pneg %p1120
      $region68: #{_lambda_.1} parent=5 // pred_check_branch
        %1123 = sbr.rel (%p1121) target = $region70
      $region69: #{_lambda_.1} parent=5 // pred_region
        %s1124 = ssub.s32 %s15, 2
        // Predicated region
        $region71: #{_lambda_.1} parent=69 // pred_check
          %p1125 = pneg %p189
        $region72: #{_lambda_.1} parent=69 // pred_check_branch
          %1127 = sbr.rel (%p1125) target = $region74
        $region73: #{_lambda_.1} parent=69 // pred_region
          %s1128 = sand.u32 %s174, 1
          %s1129 = scalar_lea.sflag [#allocation4], %s1128
          %s1130 = sand.u32 %s174, 1
          %s1131 = smul.addr %s1130, 32
          %s1132 = scalar_lea.vmem [#allocation3], %s1131
          %1133 = dma.done %s1129, 512
        $region74: #{_lambda_.1} parent=69 // pred_fallthru
          _
      $region70: #{_lambda_.1} parent=5 // pred_fallthru
        _
    $region6: #{_lambda_.1} parent=1 // loop_footer
      %s19 = sadd.s32 1, %s15
    $region7: #{_lambda_.1} parent=1 // loop_footer_branch
      %14 = sbr.rel target = $region3
    $region8: #{_lambda_.1} parent=1 // loop_exit
      _
    %1134 = vsyncpa [#allocation4], 1
    %s1135 = scalar_lea.sflag [#allocation4], 1
    %1136 = vsyncpa %s1135, 1

</llo_original>
